<compile_context>
chip_gen: v5e
topology: v5e:2x2
jax: 0.10.0
libtpu: 0.0.40
codegen_flags: <defaults>
</compile_context>

<pallas_src>
import jax
import jax.numpy as jnp
from jax import lax
from jax.experimental import pallas as pl
from jax.experimental.pallas import tpu as pltpu


_LRELU_SLOPE = 0.2


def _round_up(x, m):
    return ((x + m - 1) // m) * m


def _pick_tile(hw, tile_n, b_sz):
    """Pick a lane-axis tile: full extent if small, else a multiple of 128."""
    if hw <= 128:
        return hw                                   # full-dim block is legal
    tile = min(tile_n, _round_up(hw, 128))
    if tile % 128:
        tile = _round_up(tile, 128)
    # v7x megacore: with B == 1 make sure the spatial axis has >= 2 blocks so
    # both TensorCores get work.  Gated on B so v5e/v6e pay ~nothing.
    if b_sz == 1 and hw > 256:
        half = _round_up(-(-hw // 2), 128)
        tile = min(tile, half)
    return max(tile, 128)


def _fit_tile(tile, c_in, hidden, c_outs, in_bytes, out_bytes,
              budget=12 * 1024 * 1024):
    """Shrink the tile until the per-step VMEM working set fits the budget.

    Budget of 12 MiB keeps us under v5e's 16 MiB default scoped VMEM with
    headroom; v6e/v7x (32 MiB scoped) are never the limiter.
    """
    while tile > 512:
        footprint = (
            2 * c_in * tile * in_bytes                      # X, double-buffered
            + 2 * sum(c * tile * out_bytes for c in c_outs)  # outs, double-buf
            + hidden * tile * 4                              # f32 intermediate h
            + sum(c * tile * 4 for c in c_outs)              # f32 head temps
        )
        if footprint <= budget:
            break
        tile = _round_up(tile // 2, 128)
    return tile


def _make_kernel(n_sigmoid_rows_per_head, slope=_LRELU_SLOPE):
    """Kernel computing shared fc + LeakyReLU, then one or more 1x1-conv heads.

    Ref layout (channel-major, spatial N on the 128-lane axis):
      x:      (C_in,  tile_n)  bf16
      w_fc:   (hidden, C_in)   bf16      b_fc:   (hidden, 1)  f32
      w_h[k]: (C_out_k, hidden) bf16     b_h[k]: (C_out_k, 1) f32
      out[k]: (C_out_k, tile_n) f32

    n_sigmoid_rows_per_head[k]: sigmoid is applied to the first n rows of
    head k's output (n == C_out_k -> all rows; 0 -> none).
    """
    n_heads = len(n_sigmoid_rows_per_head)

    def kernel(*refs):
        x_ref, wfc_ref, bfc_ref = refs[0], refs[1], refs[2]
        head_refs = refs[3:3 + 2 * n_heads]
        out_refs = refs[3 + 2 * n_heads:]

        x = x_ref[...]
        # fc 1x1 conv:  (hidden, C_in) @ (C_in, N) -> (hidden, N), f32 accum.
        h = jnp.dot(wfc_ref[...], x, preferred_element_type=jnp.float32)
        h = h + bfc_ref[...]                      # bias broadcast over lanes
        h = jnp.maximum(h, slope * h)             # LeakyReLU(0.2), single VPU op

        for k, n_sig in enumerate(n_sigmoid_rows_per_head):
            w = head_refs[2 * k][...].astype(jnp.float32)
            b = head_refs[2 * k + 1][...]
            y = jnp.dot(w, h, preferred_element_type=jnp.float32) + b
            c_out = y.shape[0]
            if n_sig >= c_out:                    # whole head is sigmoid'ed
                y = jax.nn.sigmoid(y)
            elif n_sig > 0:                       # fused heads: rows [0, n_sig)
                rows = lax.broadcasted_iota(jnp.int32, y.shape, 0)
                y = jnp.where(rows < n_sig, jax.nn.sigmoid(y), y)
            out_refs[k][...] = y.astype(out_refs[k].dtype)

    return kernel


def _run_heads(x3, w_fc, b_fc, heads, tile_n=32768, io_dtype=jnp.bfloat16):
    """Run the fused forward.

    x3:    (B, C_in, HW)  -- native NCHW flattened; spatial N is lane axis.
    heads: list of (w_head (C_out, hidden), b_head (C_out, 1), n_sigmoid_rows).
    Returns a tuple of (B, C_out_k, HW) float32 arrays, one per head.
    """
    b_sz, c_in, hw = x3.shape
    hidden = w_fc.shape[0]
    c_outs = [w_h.shape[0] for (w_h, _, _) in heads]

    in_bytes = jnp.dtype(io_dtype).itemsize
    tile = _pick_tile(hw, tile_n, b_sz)
    tile = _fit_tile(tile, c_in, hidden, c_outs, in_bytes, out_bytes=4)
    tile = min(tile, _round_up(hw, 128)) if hw > 128 else hw
    grid = (b_sz, pl.cdiv(hw, tile))

    x3 = x3.astype(io_dtype)
    w_fc = w_fc.astype(io_dtype)
    b_fc = b_fc.astype(jnp.float32)

    in_specs = [
        pl.BlockSpec((None, c_in, tile), lambda b, i: (b, 0, i)),   # X
        pl.BlockSpec((hidden, c_in), lambda b, i: (0, 0)),          # W_fc
        pl.BlockSpec((hidden, 1), lambda b, i: (0, 0)),             # b_fc
    ]
    operands = [x3, w_fc, b_fc]
    out_shapes = []
    out_specs = []
    n_sig_rows = []
    for (w_h, b_h, n_sig) in heads:
        c_out = w_h.shape[0]
        in_specs.append(pl.BlockSpec((c_out, hidden), lambda b, i: (0, 0)))
        in_specs.append(pl.BlockSpec((c_out, 1), lambda b, i: (0, 0)))
        operands.extend([w_h.astype(io_dtype), b_h.astype(jnp.float32)])
        out_shapes.append(jax.ShapeDtypeStruct((b_sz, c_out, hw), jnp.float32))
        out_specs.append(pl.BlockSpec((None, c_out, tile), lambda b, i: (b, 0, i)))
        n_sig_rows.append(int(n_sig))

    kernel = _make_kernel(tuple(n_sig_rows))
    outs = pl.pallas_call(
        kernel,
        out_shape=tuple(out_shapes),
        grid_spec=pltpu.PrefetchScalarGridSpec(
            num_scalar_prefetch=0,
            grid=grid,
            in_specs=in_specs,
            out_specs=tuple(out_specs),
        ),
        compiler_params=pltpu.CompilerParams(
            dimension_semantics=("parallel", "parallel")),
    )(*operands)
    return tuple(outs)


class DiscriminatorPallas:
    """JAX/Pallas port of Discriminator(hp) (1x1-conv fc + pred/cls heads)."""

    def __init__(self, hp, key):
        # Only the configuration used by this module is supported.
        # TODO(synk): Conv2dBlock norm != 'none' / dropout > 0 not implemented.
        assert hp.get("norm_fc", "none") == "none"
        assert hp.get("activ_fc", "lrelu") == "lrelu"
        assert hp.get("drop_fc", 0) == 0

        in_fc = hp["in_dim_fc"]
        out_fc = hp["out_dim_fc"]
        out_cls = hp["out_dim_cls"]
        k = jax.random.split(key, 6)
        s_fc = 1.0 / (in_fc ** 0.5)
        s_hd = 1.0 / (out_fc ** 0.5)
        # Weights stored channel-major (C_out, C_in): torch's (C_out, C_in, 1, 1)
        # with the trailing 1x1 squeezed.  Biases (C_out, 1).
        self.w_fc = jax.random.uniform(k[0], (out_fc, in_fc), jnp.float32, -s_fc, s_fc)
        self.b_fc = jax.random.uniform(k[1], (out_fc, 1), jnp.float32, -s_fc, s_fc)
        self.w_pred = jax.random.uniform(k[2], (1, out_fc), jnp.float32, -s_hd, s_hd)
        self.b_pred = jax.random.uniform(k[3], (1, 1), jnp.float32, -s_hd, s_hd)
        self.w_cls = jax.random.uniform(k[4], (out_cls, out_fc), jnp.float32, -s_hd, s_hd)
        self.b_cls = jax.random.uniform(k[5], (out_cls, 1), jnp.float32, -s_hd, s_hd)

    def __call__(self, feat, mode, tile_n=32768):
        # feat: (B, C_in, H, W) NCHW; pure reshape, no transpose.
        b, c, h, w = feat.shape
        x3 = feat.reshape(b, c, h * w)
        if mode == "gan":
            (y3,) = _run_heads(x3, self.w_fc, self.b_fc,
                               [(self.w_pred, self.b_pred, 1)], tile_n)
        elif mode == "cls":
            (y3,) = _run_heads(x3, self.w_fc, self.b_fc,
                               [(self.w_cls, self.b_cls, 0)], tile_n)
        else:
            raise NotImplementedError(
                "Invalid mode {} for discriminator.".format(mode))
        return y3.reshape(b, -1, h, w)

    def forward_both(self, feat, tile_n=32768):
        """Fused 'gan' + 'cls' heads: X read once, one concatenated head matmul,
        one lane-dense output; sigmoid applied in-kernel to row 0 only."""
        b, c, h, w = feat.shape
        x3 = feat.reshape(b, c, h * w)
        w_both = jnp.concatenate([self.w_pred, self.w_cls], axis=0)
        b_both = jnp.concatenate([self.b_pred, self.b_cls], axis=0)
        (y3,) = _run_heads(x3, self.w_fc, self.b_fc,
                           [(w_both, b_both, 1)], tile_n)
        y_pred = y3[:, :1, :].reshape(b, 1, h, w)
        y_cls = y3[:, 1:, :].reshape(b, -1, h, w)
        return y_pred, y_cls


def _reference(feat, disc, mode, io_dtype=jnp.bfloat16):
    """Pure-JAX reference matching the kernel's bf16-in / f32-accumulate math."""
    b, c, h, w = feat.shape
    x = feat.reshape(b, c, h * w).astype(io_dtype).astype(jnp.float32)
    wfc = disc.w_fc.astype(io_dtype).astype(jnp.float32)
    hm = jnp.einsum("oc,bcn->bon", wfc, x) + disc.b_fc[None]
    hm = jnp.maximum(hm, _LRELU_SLOPE * hm)
    if mode == "gan":
        wp = disc.w_pred.astype(io_dtype).astype(jnp.float32)
        y = jax.nn.sigmoid(jnp.einsum("oc,bcn->bon", wp, hm) + disc.b_pred[None])
    else:
        wc = disc.w_cls.astype(io_dtype).astype(jnp.float32)
        y = jnp.einsum("oc,bcn->bon", wc, hm) + disc.b_cls[None]
    return y.reshape(b, -1, h, w)


if __name__ == "__main__":
    hp = {
        "in_dim_fc": 4,
        "out_dim_fc": 32,
        "out_dim_cls": 8,
        "norm_fc": "none",
        "activ_fc": "lrelu",
        "drop_fc": 0,
    }
    key = jax.random.PRNGKey(0)
    k_param, k_feat = jax.random.split(key)
    disc = DiscriminatorPallas(hp, k_param)

    # B=2, C=4, H=W=16  ->  HW = 256 per batch (single 256-lane tile each).
    feat = jax.random.normal(k_feat, (2, 4, 16, 16), jnp.float32)

    gan_out = disc(feat, "gan")                 # (2, 1, 16, 16), sigmoid scores
    cls_out = disc(feat, "cls")                 # (2, 8, 16, 16), class logits
    gan_f, cls_f = disc.forward_both(feat)      # fused two-head call
    jax.block_until_ready(gan_out)
    jax.block_until_ready(cls_out)
    jax.block_until_ready(gan_f)
    jax.block_until_ready(cls_f)

    ref_gan = _reference(feat, disc, "gan")
    ref_cls = _reference(feat, disc, "cls")
    assert gan_out.shape == (2, 1, 16, 16)
    assert cls_out.shape == (2, 8, 16, 16)
    # Tolerances loosened for bf16 inputs/weights (f32 accumulate).
    assert jnp.allclose(gan_out, ref_gan, atol=2e-3, rtol=2e-3)
    assert jnp.allclose(cls_out, ref_cls, atol=2e-3, rtol=2e-3)
    assert jnp.allclose(gan_f, ref_gan, atol=2e-3, rtol=2e-3)
    assert jnp.allclose(cls_f, ref_cls, atol=2e-3, rtol=2e-3)

    print("KERNEL_OK")
</pallas_src>

<mosaic_0001>
module attributes {stable_mosaic.version = 11 : i64} {
  func.func @kernel(%arg0: i32, %arg1: i32, %arg2: memref<1x4x256xbf16, #tpu.memory_space<vmem>>, %arg3: memref<32x4xbf16, #tpu.memory_space<vmem>>, %arg4: memref<32x1xf32, #tpu.memory_space<vmem>>, %arg5: memref<1x32xbf16, #tpu.memory_space<vmem>>, %arg6: memref<1x1xf32, #tpu.memory_space<vmem>>, %arg7: memref<1x1x256xf32, #tpu.memory_space<vmem>>) attributes {dimension_semantics = [#tpu.dimension_semantics<parallel>, #tpu.dimension_semantics<parallel>], iteration_bounds = array<i64: 2, 1>, scalar_prefetch = 0 : i64, scratch_operands = 0 : i64, tpu.core_type = #tpu.core_type<tc>, window_params = [{transform_indices = @transform_0, window_bounds = array<i64: 1, 4, 256>}, {pipeline_mode = #tpu.pipeline_mode<synchronous>, transform_indices = @transform_1, window_bounds = array<i64: 32, 4>}, {pipeline_mode = #tpu.pipeline_mode<synchronous>, transform_indices = @transform_2, window_bounds = array<i64: 32, 1>}, {pipeline_mode = #tpu.pipeline_mode<synchronous>, transform_indices = @transform_3, window_bounds = array<i64: 1, 32>}, {pipeline_mode = #tpu.pipeline_mode<synchronous>, transform_indices = @transform_4, window_bounds = array<i64: 1, 1>}, {transform_indices = @transform_5, window_bounds = array<i64: 1, 1, 256>}]} {
    %c0 = arith.constant 0 : index
    %c0_0 = arith.constant 0 : index
    %c0_1 = arith.constant 0 : index
    %0 = vector.load %arg2[%c0, %c0_0, %c0_1] : memref<1x4x256xbf16, #tpu.memory_space<vmem>>, vector<1x4x256xbf16>
    %1 = vector.shape_cast %0 : vector<1x4x256xbf16> to vector<4x256xbf16>
    %c0_2 = arith.constant 0 : index
    %c0_3 = arith.constant 0 : index
    %2 = vector.load %arg3[%c0_2, %c0_3] : memref<32x4xbf16, #tpu.memory_space<vmem>>, vector<32x4xbf16>
    %cst = arith.constant dense<0.000000e+00> : vector<32x256xf32>
    %3 = tpu.matmul %2, %1, %cst {dimension_numbers = #tpu.dot_dimension_numbers<[1], [0], [0], [1], [0, 0, 1, 1], [], []>} : vector<32x4xbf16>, vector<4x256xbf16>, vector<32x256xf32> -> vector<32x256xf32>
    %c0_4 = arith.constant 0 : index
    %c0_5 = arith.constant 0 : index
    %4 = vector.load %arg4[%c0_4, %c0_5] : memref<32x1xf32, #tpu.memory_space<vmem>>, vector<32x1xf32>
    %5 = vector.broadcast %4 : vector<32x1xf32> to vector<32x256xf32>
    %6 = arith.addf %3, %5 : vector<32x256xf32>
    %cst_6 = arith.constant 2.000000e-01 : f32
    %7 = vector.broadcast %cst_6 : f32 to vector<32x256xf32>
    %8 = arith.mulf %7, %6 : vector<32x256xf32>
    %9 = arith.maximumf %6, %8 : vector<32x256xf32>
    %c0_7 = arith.constant 0 : index
    %c0_8 = arith.constant 0 : index
    %10 = vector.load %arg5[%c0_7, %c0_8] : memref<1x32xbf16, #tpu.memory_space<vmem>>, vector<1x32xbf16>
    %11 = arith.extf %10 : vector<1x32xbf16> to vector<1x32xf32>
    %c0_9 = arith.constant 0 : index
    %c0_10 = arith.constant 0 : index
    %12 = vector.load %arg6[%c0_9, %c0_10] : memref<1x1xf32, #tpu.memory_space<vmem>>, vector<1x1xf32>
    %cst_11 = arith.constant dense<0.000000e+00> : vector<1x256xf32>
    %13 = tpu.matmul %11, %9, %cst_11 {dimension_numbers = #tpu.dot_dimension_numbers<[1], [0], [0], [1], [0, 0, 1, 1], [], []>} : vector<1x32xf32>, vector<32x256xf32>, vector<1x256xf32> -> vector<1x256xf32>
    %14 = vector.broadcast %12 : vector<1x1xf32> to vector<1x256xf32>
    %15 = arith.addf %13, %14 : vector<1x256xf32>
    %16 = arith.negf %15 : vector<1x256xf32>
    %17 = math.exp %16 : vector<1x256xf32>
    %cst_12 = arith.constant 1.000000e+00 : f32
    %18 = vector.broadcast %cst_12 : f32 to vector<1x256xf32>
    %19 = arith.addf %18, %17 : vector<1x256xf32>
    %20 = arith.divf %18, %19 : vector<1x256xf32>
    %c0_13 = arith.constant 0 : index
    %c0_14 = arith.constant 0 : index
    %c0_15 = arith.constant 0 : index
    %21 = vector.load %arg7[%c0_13, %c0_14, %c0_15] : memref<1x1x256xf32, #tpu.memory_space<vmem>>, vector<1x1x256xf32>
    %22 = vector.shape_cast %21 : vector<1x1x256xf32> to vector<1x256xf32>
    %23 = vector.shape_cast %20 : vector<1x256xf32> to vector<1x1x256xf32>
    tpu.vector_store %arg7[%c0_13, %c0_14, %c0_15], %23 {strides = array<i32>} : memref<1x1x256xf32, #tpu.memory_space<vmem>>, vector<1x1x256xf32>,
    return
  }
  func.func @transform_0(%arg0: i32, %arg1: i32) -> (i32, i32, i32) {
    %c0_i32 = arith.constant 0 : i32
    %c0_i32_0 = arith.constant 0 : i32
    return %arg0, %c0_i32, %arg1 : i32, i32, i32
  }
  func.func @transform_1(%arg0: i32, %arg1: i32) -> (i32, i32) {
    %c0_i32 = arith.constant 0 : i32
    %c0_i32_0 = arith.constant 0 : i32
    %c0_i32_1 = arith.constant 0 : i32
    return %c0_i32, %c0_i32_0 : i32, i32
  }
  func.func @transform_2(%arg0: i32, %arg1: i32) -> (i32, i32) {
    %c0_i32 = arith.constant 0 : i32
    %c0_i32_0 = arith.constant 0 : i32
    %c0_i32_1 = arith.constant 0 : i32
    return %c0_i32, %c0_i32_0 : i32, i32
  }
  func.func @transform_3(%arg0: i32, %arg1: i32) -> (i32, i32) {
    %c0_i32 = arith.constant 0 : i32
    %c0_i32_0 = arith.constant 0 : i32
    %c0_i32_1 = arith.constant 0 : i32
    return %c0_i32, %c0_i32_0 : i32, i32
  }
  func.func @transform_4(%arg0: i32, %arg1: i32) -> (i32, i32) {
    %c0_i32 = arith.constant 0 : i32
    %c0_i32_0 = arith.constant 0 : i32
    %c0_i32_1 = arith.constant 0 : i32
    return %c0_i32, %c0_i32_0 : i32, i32
  }
  func.func @transform_5(%arg0: i32, %arg1: i32) -> (i32, i32, i32) {
    %c0_i32 = arith.constant 0 : i32
    %c0_i32_0 = arith.constant 0 : i32
    return %arg0, %c0_i32, %arg1 : i32, i32, i32
  }
}

</mosaic_0001>

<llo_original>
// kernel: tpu_custom_call.1
$region0: #{tpu_custom_call.1}
  #allocation0 [shape = 'u32[]', space=smem, size = 0x4, offset = 0x4, fixed_abs, tag = 'smem constant byte address 0x4 - core index']
  #allocation1 [shape = 'u32[72,128]{1,0:T(1,128)}', space=vmem, size = 0x9000, scoped, tag = 'internal scratch']
  #allocation2 [shape = 'f32[1,1]{1,0:T(1,128)S(1)}', space=vmem, size = 0x200, scoped, tag = 'scoped memory for tpu_custom_call.1']
  %s0 = inlined_call_operand.vmem [shape: bf16[2,4,256], index: 0, kind: input, shape index: {}]
  %s1 = inlined_call_operand.vmem [shape: bf16[32,4], index: 1, kind: input, shape index: {}]
  %s2 = inlined_call_operand.vmem [shape: f32[32,1], index: 2, kind: input, shape index: {}]
  %s3 = inlined_call_operand.vmem [shape: bf16[1,32], index: 3, kind: input, shape index: {}]
  %s4 = inlined_call_operand.<no memory space> [shape: f32[1,1], index: 4, kind: input, shape index: {}]
  %s5 = inlined_call_operand.hbm [shape: f32[2,1,256], index: 5, kind: output, shape index: {}]
  %s6 = sld [smem:[#allocation0]]
  $region53: #{tpu_custom_call.1} parent=0
    _
  %s8 = ssub.s32 1, %s6
  %s9 = scalar_select 0, %s8, %s6
  %v10 = vstv %s4
  %11 = vst [vmem:[#allocation2] sm:$0x1] %v10
  $region1: #{tpu_custom_call.1} parent=0
    #allocation3 [shape = 'u8[2048]{0}', space=vmem, size = 0x800, scoped, tag = 'output window, operand 0']
    #allocation4 [shape = 's32[2]{0}', space=sflag, size = 0x8, scoped, tag = 'scoped memory for tpu_custom_call.1']
    %12 = vsyncpa [#allocation4], 0
    %s13 = scalar_lea.sflag [#allocation4], 1
    %14 = vsyncpa %s13, 0
    loop: start=0, step=1, limit=4
    $region2: #{tpu_custom_call.1} parent=1 // loop_pre_header
      _
    $region3: #{tpu_custom_call.1} parent=1 // loop_header
      %s16 = sphi 0, %s20
      %p17 = scmp.ge.s32.totalorder %s16, 4
      %s23 = sphi 0, %s35
      %s24 = sphi 0, %s31
      %s25 = sphi 0, %s23
      %s26 = sphi 0, %s24
      %s27 = sphi 0, %s25
      %s28 = sphi 0, %s26
      %s40 = sphi 0, %s42
      %s43 = sphi 0, %s40
      %s44 = sphi 0, %s43
      %s60 = sphi 0, %s44
      %s64 = sphi 0, %s64
      %s66 = sphi 0, %s64
      %s67 = sphi 0, %s66
      %s81 = sphi 0, %s67
      %s85 = sphi 0, %s85
      %s87 = sphi 0, %s85
      %s88 = sphi 0, %s87
      %s102 = sphi 0, %s88
      %s106 = sphi 0, %s106
      %s108 = sphi 0, %s106
      %s109 = sphi 0, %s108
      %s123 = sphi 0, %s109
      %s127 = sphi 0, %s127
      %s129 = sphi 0, %s127
      %s130 = sphi 0, %s129
      %s144 = sphi 0, %s130
      %s152 = sphi 0, %s154
      %s155 = sphi 0, %s152
      %s156 = sphi 0, %s155
      %s172 = sphi 0, %s156
    $region4: #{tpu_custom_call.1} parent=1 // loop_header_branch
      %19 = sbr.rel (%p17) target = $region8
    $region5: #{tpu_custom_call.1} parent=1 // loop_body
      %s21 = ssub.s32 %s16, 1
      %s22 = ssub.s32 %s16, 2
      %s29 = sadd.s32 1, %s24
      %p30 = scmp.ge.s32.totalorder %s29, 1
      %s31 = scalar_select %p30, 0, %s29
      %s32 = sadd.s32 1, %s23
      %s33 = scalar_select %p30, %s32, %s23
      %p34 = scmp.ge.s32.totalorder %s33, 2
      %s35 = scalar_select %p34, 0, %s33
      %s36 = ssub.s32 %s23, %s35
      %s37 = ssub.s32 %s24, %s31
      %s38 = sor.u32 %s36, %s37
      %p39 = scmp.eq.s32.totalorder %s38, 0
      %s41 = sadd.s32 %s40, 1
      %s42 = scalar_select %p39, %s40, %s41
      %p45 = pneg %p39
      %p46 = scmp.eq.s32.totalorder %s16, 1
      %p47 = por %p45, %p46
      %p48 = scmp.ne.s32.totalorder %s40, %s43
      %p49 = scmp.eq.s32.totalorder %s16, 0
      %p50 = por %p48, %p49
      %p51 = scmp.ne.s32.totalorder %s40, %s43
      %p52 = scmp.eq.s32.totalorder %s21, 1
      %p53 = por %p51, %p52
      %p54 = scmp.ne.s32.totalorder %s43, %s44
      %p55 = scmp.eq.s32.totalorder %s21, 0
      %p56 = por %p54, %p55
      %p57 = scmp.ne.s32.totalorder %s43, %s44
      %p58 = scmp.eq.s32.totalorder %s22, 1
      %p59 = por %p57, %p58
      %p61 = scmp.ne.s32.totalorder %s44, %s60
      %p62 = scmp.eq.s32.totalorder %s22, 0
      %p63 = por %p61, %p62
      %s65 = sadd.s32 %s64, 1
      %p68 = scmp.eq.s32.totalorder %s16, 1
      %p69 = scmp.ne.s32.totalorder %s64, %s66
      %p70 = scmp.eq.s32.totalorder %s16, 0
      %p71 = por %p69, %p70
      %p72 = scmp.ne.s32.totalorder %s64, %s66
      %p73 = scmp.eq.s32.totalorder %s21, 1
      %p74 = por %p72, %p73
      %p75 = scmp.ne.s32.totalorder %s66, %s67
      %p76 = scmp.eq.s32.totalorder %s21, 0
      %p77 = por %p75, %p76
      %p78 = scmp.ne.s32.totalorder %s66, %s67
      %p79 = scmp.eq.s32.totalorder %s22, 1
      %p80 = por %p78, %p79
      %p82 = scmp.ne.s32.totalorder %s67, %s81
      %p83 = scmp.eq.s32.totalorder %s22, 0
      %p84 = por %p82, %p83
      %s86 = sadd.s32 %s85, 1
      %p89 = scmp.eq.s32.totalorder %s16, 1
      %p90 = scmp.ne.s32.totalorder %s85, %s87
      %p91 = scmp.eq.s32.totalorder %s16, 0
      %p92 = por %p90, %p91
      %p93 = scmp.ne.s32.totalorder %s85, %s87
      %p94 = scmp.eq.s32.totalorder %s21, 1
      %p95 = por %p93, %p94
      %p96 = scmp.ne.s32.totalorder %s87, %s88
      %p97 = scmp.eq.s32.totalorder %s21, 0
      %p98 = por %p96, %p97
      %p99 = scmp.ne.s32.totalorder %s87, %s88
      %p100 = scmp.eq.s32.totalorder %s22, 1
      %p101 = por %p99, %p100
      %p103 = scmp.ne.s32.totalorder %s88, %s102
      %p104 = scmp.eq.s32.totalorder %s22, 0
      %p105 = por %p103, %p104
      %s107 = sadd.s32 %s106, 1
      %p110 = scmp.eq.s32.totalorder %s16, 1
      %p111 = scmp.ne.s32.totalorder %s106, %s108
      %p112 = scmp.eq.s32.totalorder %s16, 0
      %p113 = por %p111, %p112
      %p114 = scmp.ne.s32.totalorder %s106, %s108
      %p115 = scmp.eq.s32.totalorder %s21, 1
      %p116 = por %p114, %p115
      %p117 = scmp.ne.s32.totalorder %s108, %s109
      %p118 = scmp.eq.s32.totalorder %s21, 0
      %p119 = por %p117, %p118
      %p120 = scmp.ne.s32.totalorder %s108, %s109
      %p121 = scmp.eq.s32.totalorder %s22, 1
      %p122 = por %p120, %p121
      %p124 = scmp.ne.s32.totalorder %s109, %s123
      %p125 = scmp.eq.s32.totalorder %s22, 0
      %p126 = por %p124, %p125
      %s128 = sadd.s32 %s127, 1
      %p131 = scmp.eq.s32.totalorder %s16, 1
      %p132 = scmp.ne.s32.totalorder %s127, %s129
      %p133 = scmp.eq.s32.totalorder %s16, 0
      %p134 = por %p132, %p133
      %p135 = scmp.ne.s32.totalorder %s127, %s129
      %p136 = scmp.eq.s32.totalorder %s21, 1
      %p137 = por %p135, %p136
      %p138 = scmp.ne.s32.totalorder %s129, %s130
      %p139 = scmp.eq.s32.totalorder %s21, 0
      %p140 = por %p138, %p139
      %p141 = scmp.ne.s32.totalorder %s129, %s130
      %p142 = scmp.eq.s32.totalorder %s22, 1
      %p143 = por %p141, %p142
      %p145 = scmp.ne.s32.totalorder %s130, %s144
      %p146 = scmp.eq.s32.totalorder %s22, 0
      %p147 = por %p145, %p146
      %s148 = ssub.s32 %s23, %s35
      %s149 = ssub.s32 %s24, %s31
      %s150 = sor.u32 %s148, %s149
      %p151 = scmp.eq.s32.totalorder %s150, 0
      %s153 = sadd.s32 %s152, 1
      %s154 = scalar_select %p151, %s152, %s153
      %p157 = pneg %p151
      %p158 = scmp.eq.s32.totalorder %s16, 1
      %p159 = por %p157, %p158
      %p160 = scmp.ne.s32.totalorder %s152, %s155
      %p161 = scmp.eq.s32.totalorder %s16, 0
      %p162 = por %p160, %p161
      %p163 = scmp.ne.s32.totalorder %s152, %s155
      %p164 = scmp.eq.s32.totalorder %s21, 1
      %p165 = por %p163, %p164
      %p166 = scmp.ne.s32.totalorder %s155, %s156
      %p167 = scmp.eq.s32.totalorder %s21, 0
      %p168 = por %p166, %p167
      %p169 = scmp.ne.s32.totalorder %s155, %s156
      %p170 = scmp.eq.s32.totalorder %s22, 1
      %p171 = por %p169, %p170
      %p173 = scmp.ne.s32.totalorder %s156, %s172
      %p174 = scmp.eq.s32.totalorder %s22, 0
      %p175 = por %p173, %p174
      %p176 = scmp.le.s32.totalorder 1, %s16
      %p177 = scmp.lt.s32.totalorder %s16, 3
      %p178 = pnand %p176, %p177
      %p179 = pneg %p178
      // Predicated region
      $region9: #{tpu_custom_call.1} parent=5 // pred_check
        _
      $region10: #{tpu_custom_call.1} parent=5 // pred_check_branch
        %181 = sbr.rel (%p178) target = $region12
      $region11: #{tpu_custom_call.1} parent=5 // pred_region
        %s182 = ssub.s32 %s16, 1
        // Predicated region
        $region13: #{tpu_custom_call.1} parent=11 // pred_check
          %p183 = pneg %p77
        $region14: #{tpu_custom_call.1} parent=11 // pred_check_branch
          %185 = sbr.rel (%p183) target = $region16
        $region15: #{tpu_custom_call.1} parent=11 // pred_region
          _
        $region16: #{tpu_custom_call.1} parent=11 // pred_fallthru
          _
        // Predicated region
        $region17: #{tpu_custom_call.1} parent=11 // pred_check
          %p186 = pneg %p98
        $region18: #{tpu_custom_call.1} parent=11 // pred_check_branch
          %188 = sbr.rel (%p186) target = $region20
        $region19: #{tpu_custom_call.1} parent=11 // pred_region
          _
        $region20: #{tpu_custom_call.1} parent=11 // pred_fallthru
          _
        // Predicated region
        $region21: #{tpu_custom_call.1} parent=11 // pred_check
          %p189 = pneg %p119
        $region22: #{tpu_custom_call.1} parent=11 // pred_check_branch
          %191 = sbr.rel (%p189) target = $region24
        $region23: #{tpu_custom_call.1} parent=11 // pred_region
          _
        $region24: #{tpu_custom_call.1} parent=11 // pred_fallthru
          _
        // Predicated region
        $region25: #{tpu_custom_call.1} parent=11 // pred_check
          %p192 = pneg %p140
        $region26: #{tpu_custom_call.1} parent=11 // pred_check_branch
          %194 = sbr.rel (%p192) target = $region28
        $region27: #{tpu_custom_call.1} parent=11 // pred_region
          _
        $region28: #{tpu_custom_call.1} parent=11 // pred_fallthru
          _
      $region12: #{tpu_custom_call.1} parent=5 // pred_fallthru
        _
      %p195 = scmp.lt.s32.totalorder %s16, 2
      // Predicated region
      $region29: #{tpu_custom_call.1} parent=5 // pred_check
        %p196 = pneg %p195
      $region30: #{tpu_custom_call.1} parent=5 // pred_check_branch
        %198 = sbr.rel (%p196) target = $region32
      $region31: #{tpu_custom_call.1} parent=5 // pred_region
        // Predicated region
        $region33: #{tpu_custom_call.1} parent=31 // pred_check
          %p199 = pneg %p50
        $region34: #{tpu_custom_call.1} parent=31 // pred_check_branch
          %201 = sbr.rel (%p199) target = $region36
        $region35: #{tpu_custom_call.1} parent=31 // pred_region
          %s202 = smul.u32 2, %s24
          %p203 = scmp.lt.s32.totalorder %s23, 1
          %s204 = scalar_select %p203, %s23, 1
          %p205 = scmp.lt.s32.totalorder %s202, 1
          %s206 = scalar_select %p205, %s202, 1
          %s207 = smul.addr %s204, 2
          %s208 = sadd.s32 %s206, %s207
          %s209 = smul.addr %s208, 2
          %s210 = scalar_lea.vmem %s0, %s209
          %s211 = smul.u32 2, %s24
        $region36: #{tpu_custom_call.1} parent=31 // pred_fallthru
          _
      $region32: #{tpu_custom_call.1} parent=5 // pred_fallthru
        _
      %p212 = scmp.le.s32.totalorder 1, %s16
      %p213 = scmp.lt.s32.totalorder %s16, 3
      %p214 = pnand %p212, %p213
      %p215 = pneg %p214
      // Predicated region
      $region37: #{tpu_custom_call.1} parent=5 // pred_check
        _
      $region38: #{tpu_custom_call.1} parent=5 // pred_check_branch
        %217 = sbr.rel (%p214) target = $region40
      $region39: #{tpu_custom_call.1} parent=5 // pred_region
        %s218 = ssub.s32 %s16, 1
        %s219 = smul.u32 2, %s26
        %p220 = scmp.lt.s32.totalorder %s25, 1
        %s221 = scalar_select %p220, %s25, 1
        %p222 = scmp.lt.s32.totalorder %s219, 1
        %s223 = scalar_select %p222, %s219, 1
        %s224 = smul.addr %s221, 2
        %s225 = sadd.s32 %s223, %s224
        %s226 = smul.addr %s225, 2
        %s227 = scalar_lea.vmem %s0, %s226
        %p228 = pneg %p56
        %p229 = pneg %p53
        %p230 = pneg %p77
        %p231 = pneg %p74
        %p232 = pneg %p98
        %p233 = pneg %p95
        %p234 = pneg %p119
        %p235 = pneg %p116
        %p236 = pneg %p140
        %p237 = pneg %p137
        %p238 = pneg %p168
        %p239 = pneg %p165
        %s240 = sand.u32 %s155, 1
        %s241 = scalar_lea.sflag [#allocation4], %s240
        %s242 = sand.u32 %s155, 1
        %s243 = smul.addr %s242, 2
        %s244 = scalar_lea.vmem [#allocation3], %s243
        %s245 = smul.u32 2, %s26
        %p246 = scmp.lt.s32.totalorder %s25, 1
        %s247 = scalar_select %p246, %s25, 1
        %p248 = scmp.lt.s32.totalorder %s245, 1
        %s249 = scalar_select %p248, %s245, 1
        %s250 = smul.addr %s247, 2
        %s251 = sadd.s32 %s249, %s250
        %s252 = smul.addr %s251, 2
        %s253 = scalar_lea.vmem %s0, %s252
        %s254 = smul.u32 2, %s26
        %s255 = smul.u32 2, %s26
        %v257 = vld [vmem:[%s253] sm:$0xf]
        %v258 = vld [vmem:[%s1] sm:$0xf]
        %v259 = vld [vmem:[%s1 + $0x4] sm:$0xf]
        %v260 = vld [vmem:[%s1 + $0x8] sm:$0xf]
        %v261 = vld [vmem:[%s1 + $0xc] sm:$0xf]
        %v262 = vld [vmem:[%s2] sm:$0xff]
        %v263 = vld [vmem:[%s2 + $0x8] sm:$0xff]
        %v264 = vld [vmem:[%s2 + $0x10] sm:$0xff]
        %v265 = vld [vmem:[%s2 + $0x18] sm:$0xff]
        %267 = vset.pattern.permute.xlu0 0
        %268 = vperm.xlu0 %267, %v262
        %v269 = vpop.permute.xlu0 %268
        %272 = vset.pattern.permute.xlu0 0
        %273 = vperm.xlu0 %272, %v263
        %v274 = vpop.permute.xlu0 %273
        %277 = vset.pattern.permute.xlu0 0
        %278 = vperm.xlu0 %277, %v264
        %v279 = vpop.permute.xlu0 %278
        %282 = vset.pattern.permute.xlu0 0
        %283 = vperm.xlu0 %282, %v265
        %v284 = vpop.permute.xlu0 %283
        %v290 = vunpack.c.l.b16 %v258
        %v291 = vunpack.c.l.b16 %v259
        %v292 = vunpack.c.l.b16 %v260
        %v293 = vunpack.c.l.b16 %v261
        %v294 = vpack.c.b16 %v291, %v290
        %v295 = vpack.c.b16 %v293, %v292
        %297 = vst [vmem:[#allocation1] ss:$4 sm:$0xff] %v257
        %v298 = vld.sshfl [vmem:[#allocation1] sm:$0xff pattern:$0x73625140]
        %v299 = vld.sshfl [vmem:[#allocation1 + $0x8] sm:$0xff pattern:$0x73625140]
        %vm300 = vcmask 31744
        %v302 = vsel %vm300, %v294, 0
        %v305 = vsel %vm300, %v295, 0
        %vm307 = vcmask 1041408
        %v308 = vsel %vm307, %v298, 0
        %v310 = vsel %vm307, %v299, 0
        %312 = vmatpush.bf16.msra.mxu0 0
        %313 = vmatpush.bf16.msra.mxu0 0
        %314 = vmatpush.bf16.msra.mxu0 0
        %315 = vmatpush.bf16.msra.mxu0 0
        %316 = vmatpush.bf16.msra.mxu0 0
        %317 = vmatpush.bf16.msra.mxu0 0
        %318 = vmatpush.bf16.msra.mxu0 0
        %319 = vmatpush.bf16.msra.mxu0 %v308
        %320 = vmatmul.bf16.gmra.mxu0 %v302
        %v321 = vpop.f32.mrf.mxu0
        %v322 = vadd.f32 %v269, %v321
        %v323 = vpop.f32.mrf.mxu0
        %v324 = vadd.f32 %v274, %v323
        %325 = vmatmul.bf16.gmra.mxu0 %v305
        %v326 = vpop.f32.mrf.mxu0
        %v327 = vadd.f32 %v279, %v326
        %v328 = vpop.f32.mrf.mxu0
        %v329 = vadd.f32 %v284, %v328
        %330 = vdwg.mxu0
        %331 = vmatpush.bf16.msra.mxu0 0
        %332 = vmatpush.bf16.msra.mxu0 0
        %333 = vmatpush.bf16.msra.mxu0 0
        %334 = vmatpush.bf16.msra.mxu0 0
        %335 = vmatpush.bf16.msra.mxu0 0
        %336 = vmatpush.bf16.msra.mxu0 0
        %337 = vmatpush.bf16.msra.mxu0 0
        %338 = vmatpush.bf16.msra.mxu0 %v310
        %339 = vmatmul.bf16.gmra.mxu0 %v302
        %v340 = vpop.f32.mrf.mxu0
        %v341 = vadd.f32 %v269, %v340
        %v342 = vpop.f32.mrf.mxu0
        %v343 = vadd.f32 %v274, %v342
        %344 = vmatmul.bf16.gmra.mxu0 %v305
        %v345 = vpop.f32.mrf.mxu0
        %v346 = vadd.f32 %v279, %v345
        %v347 = vpop.f32.mrf.mxu0
        %v348 = vadd.f32 %v284, %v347
        %349 = vdwg.mxu0
        %v350 = vmul.f32 %v322, 0.2
        %v351 = vmul.f32 %v341, 0.2
        %v352 = vmul.f32 %v324, 0.2
        %v353 = vmul.f32 %v343, 0.2
        %v354 = vmul.f32 %v327, 0.2
        %v355 = vmul.f32 %v346, 0.2
        %v356 = vmul.f32 %v329, 0.2
        %v357 = vmul.f32 %v348, 0.2
        %v358 = vmax.f32 %v322, %v350
        %v359 = vmax.f32 %v341, %v351
        %v360 = vmax.f32 %v324, %v352
        %v361 = vmax.f32 %v343, %v353
        %v362 = vmax.f32 %v327, %v354
        %v363 = vmax.f32 %v346, %v355
        %v364 = vmax.f32 %v329, %v356
        %v365 = vmax.f32 %v348, %v357
        %v366 = vld [vmem:[%s3] sm:$0x1]
        %v367 = vunpack.c.l.bf16 %v366
        %v368 = vld [vmem:[#allocation2] sm:$0x1]
        %370 = vset.pattern.permute.xlu0 0
        %371 = vperm.xlu0 %370, %v368
        %v372 = vpop.permute.xlu0 %371
        %v374 = vperm.slane %v372, 0
        %vm375 = vcmask 261120
        %v377 = vsel %vm375, %v367, 0
        %379 = vmatpush.msra.mxu0 0.0
        %380 = vmatpush.msra.mxu0 0.0
        %381 = vmatpush.msra.mxu0 0.0
        %382 = vmatpush.msra.mxu0 0.0
        %383 = vmatpush.msra.mxu0 0.0
        %384 = vmatpush.msra.mxu0 0.0
        %385 = vmatpush.msra.mxu0 0.0
        %386 = vmatpush.msra.mxu0 0.0
        %387 = vmatpush.msra.mxu0 0.0
        %388 = vmatpush.msra.mxu0 0.0
        %389 = vmatpush.msra.mxu0 0.0
        %390 = vmatpush.msra.mxu0 0.0
        %391 = vmatpush.msra.mxu0 %v364
        %392 = vmatpush.msra.mxu0 %v362
        %393 = vmatpush.msra.mxu0 %v360
        %394 = vmatpush.msra.mxu0 %v358
        %395 = vmatmul.f32.gmra.mxu0 %v377
        %v396 = vpop.f32.mrf.mxu0
        %v397 = vadd.f32 %v374, %v396
        %398 = vdwg.mxu0
        %399 = vmatpush.msra.mxu0 0.0
        %400 = vmatpush.msra.mxu0 0.0
        %401 = vmatpush.msra.mxu0 0.0
        %402 = vmatpush.msra.mxu0 0.0
        %403 = vmatpush.msra.mxu0 0.0
        %404 = vmatpush.msra.mxu0 0.0
        %405 = vmatpush.msra.mxu0 0.0
        %406 = vmatpush.msra.mxu0 0.0
        %407 = vmatpush.msra.mxu0 0.0
        %408 = vmatpush.msra.mxu0 0.0
        %409 = vmatpush.msra.mxu0 0.0
        %410 = vmatpush.msra.mxu0 0.0
        %411 = vmatpush.msra.mxu0 %v365
        %412 = vmatpush.msra.mxu0 %v363
        %413 = vmatpush.msra.mxu0 %v361
        %414 = vmatpush.msra.mxu0 %v359
        %415 = vmatmul.f32.gmra.mxu0 %v377
        %v416 = vpop.f32.mrf.mxu0
        %v417 = vadd.f32 %v374, %v416
        %418 = vdwg.mxu0
        %v419 = vxor.u32 %v397, 2147483648
        %v420 = vxor.u32 %v417, 2147483648
        %v421 = vmul.f32 %v419, 1.442695
        %v422 = vpow.pop %v421
        %v423 = vmul.f32 %v420, 1.442695
        %v424 = vpow.pop %v423
        %v425 = vadd.f32 %v422, 1.0
        %v426 = vadd.f32 %v424, 1.0
        %v427 = vrcp.pop %v425
        %v428 = vmul.f32 %v425, %v427
        %v429 = vsub.f32 1.0, %v428
        %v430 = vmul.f32 %v427, %v429
        %v431 = vadd.f32 %v427, %v430
        %vm432 = vweird.f32 %v425
        %vm433 = vweird.f32 %v427
        %vm434 = vmor %vm432, %vm433
        %v435 = vsel %vm434, %v427, %v431
        %v436 = vand.u32 2147483647, %v425
        %vm437 = vcmp.eq.f32.partialorder %v436, 8.507059e+37
        %v438 = vand.u32 %v425, 2147483648
        %v439 = vor.u32 1.1754944e-38, %v438
        %v440 = vsel %vm437, %v439, %v435
        %v441 = vmul.f32 1.0, %v440
        %v442 = vrcp.pop %v426
        %v443 = vmul.f32 %v426, %v442
        %v444 = vsub.f32 1.0, %v443
        %v445 = vmul.f32 %v442, %v444
        %v446 = vadd.f32 %v442, %v445
        %vm447 = vweird.f32 %v426
        %vm448 = vweird.f32 %v442
        %vm449 = vmor %vm447, %vm448
        %v450 = vsel %vm449, %v442, %v446
        %v451 = vand.u32 2147483647, %v426
        %vm452 = vcmp.eq.f32.partialorder %v451, 8.507059e+37
        %v453 = vand.u32 %v426, 2147483648
        %v454 = vor.u32 1.1754944e-38, %v453
        %v455 = vsel %vm452, %v454, %v450
        %v456 = vmul.f32 1.0, %v455
        %v459 = vrot.slane %v456, 7
        %vm460 = vcmask 1040384
        %v461 = vsel %vm460, %v441, %v459
        %v463 = vlaneseq
        %vm464 = vcmp.ge.s32.totalorder %v463, 0
        %vm465 = vcmp.lt.s32.totalorder %v463, 256
        %vm466 = vmand %vm464, %vm465
        %467 = vst.msk [vmem:[%s244] sm:$0x3] %vm466, %v461
        %s468 = sand.u32 %s155, 1
        %s469 = scalar_lea.sflag [#allocation4], %s468
        %s470 = sand.u32 %s155, 1
        %s471 = smul.addr %s470, 2
        %s472 = scalar_lea.vmem [#allocation3], %s471
        // Predicated region
        $region41: #{tpu_custom_call.1} parent=39 // pred_check
          %p473 = pneg %p165
        $region42: #{tpu_custom_call.1} parent=39 // pred_check_branch
          %475 = sbr.rel (%p473) target = $region44
        $region43: #{tpu_custom_call.1} parent=39 // pred_region
          %s476 = smul.u32 2, %s26
          %478 = vsyncadd %s469, 0
          %s479 = smul.addr %s25, 2
          %s480 = sadd.s32 %s476, %s479
          %s481 = scalar_lea.hbm %s5, %s480
          %s483 = sshll.u32 %s472, 4
          %s484 = int_to_ptr.vmem [resolvable:$true] %s483
          %s485 = sshll.u32 %s481, 4
          %s486 = int_to_ptr.hbm [resolvable:$true] %s485
          %488 = dma.vmem_to_hbm [thread:$0]  %s484, 32, %s486, %s469
        $region44: #{tpu_custom_call.1} parent=39 // pred_fallthru
          _
      $region40: #{tpu_custom_call.1} parent=5 // pred_fallthru
        _
      %p489 = scmp.le.s32.totalorder 2, %s16
      // Predicated region
      $region45: #{tpu_custom_call.1} parent=5 // pred_check
        %p490 = pneg %p489
      $region46: #{tpu_custom_call.1} parent=5 // pred_check_branch
        %492 = sbr.rel (%p490) target = $region48
      $region47: #{tpu_custom_call.1} parent=5 // pred_region
        %s493 = ssub.s32 %s16, 2
        // Predicated region
        $region49: #{tpu_custom_call.1} parent=47 // pred_check
          %p494 = pneg %p171
        $region50: #{tpu_custom_call.1} parent=47 // pred_check_branch
          %496 = sbr.rel (%p494) target = $region52
        $region51: #{tpu_custom_call.1} parent=47 // pred_region
          %s497 = sand.u32 %s156, 1
          %s498 = scalar_lea.sflag [#allocation4], %s497
          %s499 = sand.u32 %s156, 1
          %s500 = smul.addr %s499, 2
          %s501 = scalar_lea.vmem [#allocation3], %s500
          %503 = dma.done %s498, 32
        $region52: #{tpu_custom_call.1} parent=47 // pred_fallthru
          _
      $region48: #{tpu_custom_call.1} parent=5 // pred_fallthru
        _
    $region6: #{tpu_custom_call.1} parent=1 // loop_footer
      %s20 = sadd.s32 1, %s16
    $region7: #{tpu_custom_call.1} parent=1 // loop_footer_branch
      %15 = sbr.rel target = $region3
    $region8: #{tpu_custom_call.1} parent=1 // loop_exit
      _
    %504 = vsyncpa [#allocation4], 1
    %s505 = scalar_lea.sflag [#allocation4], 1
    %506 = vsyncpa %s505, 1

</llo_original>
